<compile_context>
chip_gen: v7x
topology: tpu7x:2x2x1
jax: 0.10.0
libtpu: 0.0.40
codegen_flags: <defaults>
</compile_context>

<pallas_src>
import functools

import jax
import jax.numpy as jnp
from jax import lax
from jax.experimental import pallas as pl
from jax.experimental.pallas import tpu as pltpu


def _linear_dropout_kernel(x_ref, wt_ref, b_ref, s_ref, o_ref):
    # x_ref:  (tm, K)      input dtype (cast to compute dtype in-kernel)
    # wt_ref: (K, N_out)   compute dtype (pre-transposed weight, grid-invariant)
    # b_ref:  (1, N_out)   f32 bias
    # s_ref:  (tm, 1)      f32 Dropout2d scale: 0.0 (dropped) or 1/(1-p)
    # o_ref:  (tm, N_out)  output dtype
    x = x_ref[...].astype(wt_ref.dtype)          # in-kernel cast, hidden under DMA
    acc = jnp.dot(x, wt_ref[...], preferred_element_type=jnp.float32)
    acc = (acc + b_ref[...]) * s_ref[...]        # bias add + dropout scale, f32
    o_ref[...] = acc.astype(o_ref.dtype)


def _round_up(a: int, b: int) -> int:
    return (a + b - 1) // b * b


@functools.partial(
    jax.jit, static_argnames=("dropout_rate", "training", "tm", "compute_dtype"))
def linear_dropout(x, weight, bias, chan_keep, dropout_rate=0.5, *,
                   training=True, tm=512, compute_dtype=jnp.bfloat16):
    """x: (N, C, H, K), weight: (N_out, K), bias: (N_out,),
    chan_keep: (N, C) bool — True means the (n, c) channel survives Dropout2d.
    compute_dtype=jnp.float32 gives exact nn.Linear numerics (bf16 is the
    MXU-friendly default)."""
    if tm % 128 != 0 or tm <= 0:
        raise ValueError("tm must be a positive multiple of 128")

    N, C, H, K = x.shape
    N_out = weight.shape[0]
    M = N * C * H

    # ---- row tiling: never hard-pad x; clamp tm for small M, and keep >= 2
    # row blocks for larger M so the "parallel" axis feeds both v7x TCs.
    if M <= 256:
        tm_eff = min(tm, _round_up(M, 8))
    else:
        tm_eff = min(tm, _round_up(pl.cdiv(M, 2), 128))
    num_blocks = pl.cdiv(M, tm_eff)
    Mp = num_blocks * tm_eff              # only the tiny scale vector is padded

    x2d = x.reshape(M, K)                                   # no cast, no pad
    wt = jnp.transpose(weight).astype(compute_dtype)        # (K, N_out), one-time
    b2d = bias.astype(jnp.float32).reshape(1, N_out)

    # ---- per-row Dropout2d scale: 0.0 for dropped (n, c) channels, else 1/(1-p)
    if (not training) or dropout_rate <= 0.0:
        row_scale = jnp.ones((Mp, 1), jnp.float32)
    else:
        keep_scale = 0.0 if dropout_rate >= 1.0 else 1.0 / (1.0 - dropout_rate)
        sc = jnp.where(chan_keep, jnp.float32(keep_scale), jnp.float32(0.0))
        row_scale = jnp.broadcast_to(sc[:, :, None], (N, C, H)).reshape(M, 1)
        if Mp != M:
            row_scale = jnp.pad(row_scale, ((0, Mp - M), (0, 0)))

    cost = pl.CostEstimate(
        flops=2 * M * K * N_out,
        transcendentals=0,
        bytes_accessed=(M * K * x.dtype.itemsize
                        + K * N_out * jnp.dtype(compute_dtype).itemsize
                        + N_out * 4 + Mp * 4
                        + M * N_out * x.dtype.itemsize),
    )

    out2d = pl.pallas_call(
        _linear_dropout_kernel,
        out_shape=jax.ShapeDtypeStruct((M, N_out), x.dtype),
        grid=(num_blocks,),
        in_specs=[
            pl.BlockSpec((tm_eff, K), lambda i: (i, 0)),    # x rows (ragged tail OK)
            pl.BlockSpec((K, N_out), lambda i: (0, 0)),     # weight^T (grid-invariant)
            pl.BlockSpec((1, N_out), lambda i: (0, 0)),     # bias     (grid-invariant)
            pl.BlockSpec((tm_eff, 1), lambda i: (i, 0)),    # per-row dropout scale
        ],
        out_specs=pl.BlockSpec((tm_eff, N_out), lambda i: (i, 0)),
        compiler_params=pltpu.CompilerParams(
            dimension_semantics=("parallel",),
            # Works on every generation (v5e scoped default is only 16 MiB).
            # Raise on v5e/v6e if tm or a resident weight grows; keep <= ~48 MiB
            # on v7x (64 MiB physical per TC).
            vmem_limit_bytes=32 * 1024 * 1024,
        ),
        cost_estimate=cost,
    )(x2d, wt, b2d, row_scale)

    return out2d.reshape(N, C, H, N_out)


if __name__ == "__main__":
    key = jax.random.PRNGKey(0)
    k_x, k_w, k_b, k_d = jax.random.split(key, 4)

    # Small shapes: batch=2, channels=4, spatial=8, in_features=32, out_features=16
    N, C, H, K, N_out = 2, 4, 8, 32, 16
    dropout_rate = 0.5

    x = jax.random.normal(k_x, (N, C, H, K), dtype=jnp.float32)
    # Deterministic synthetic nn.Linear parameters (Kaiming-uniform-like scale).
    bound = 1.0 / float(K) ** 0.5
    weight = jax.random.uniform(k_w, (N_out, K), minval=-bound, maxval=bound,
                                dtype=jnp.float32)
    bias = jax.random.uniform(k_b, (N_out,), minval=-bound, maxval=bound,
                              dtype=jnp.float32)
    # Dropout2d channel mask (training mode): drop each (n, c) channel w.p. 0.5.
    # TODO(synk): channel mask is drawn with jax.random, not PyTorch's RNG stream.
    chan_keep = jax.random.bernoulli(k_d, p=1.0 - dropout_rate, shape=(N, C))

    out = linear_dropout(x, weight, bias, chan_keep, dropout_rate=dropout_rate)
    out = jax.block_until_ready(out)

    # Pure-JAX reference (kernel feeds the MXU bf16 operands; compare against
    # the same bf16-rounded operands accumulated in f32).
    xb = x.astype(jnp.bfloat16).astype(jnp.float32)
    wb = weight.astype(jnp.bfloat16).astype(jnp.float32)
    ref = jnp.einsum("nchk,ok->ncho", xb, wb,
                     precision=lax.Precision.HIGHEST) + bias
    ref = ref * jnp.where(chan_keep, 1.0 / (1.0 - dropout_rate), 0.0)[:, :, None, None]

    assert out.shape == (N, C, H, N_out)
    assert jnp.allclose(out, ref, atol=1e-4, rtol=1e-4)

    print("KERNEL_OK")
</pallas_src>

<mosaic_0001>
module attributes {stable_mosaic.version = 11 : i64} {
  func.func @_linear_dropout_kernel(%arg0: i32, %arg1: memref<64x32xf32, #tpu.memory_space<vmem>>, %arg2: memref<32x16xbf16, #tpu.memory_space<vmem>>, %arg3: memref<1x16xf32, #tpu.memory_space<vmem>>, %arg4: memref<64x1xf32, #tpu.memory_space<vmem>>, %arg5: memref<64x16xf32, #tpu.memory_space<vmem>>) attributes {dimension_semantics = [#tpu.dimension_semantics<parallel>], iteration_bounds = array<i64: 1>, scalar_prefetch = 0 : i64, scratch_operands = 0 : i64, tpu.core_type = #tpu.core_type<tc>, window_params = [{transform_indices = @transform_0, window_bounds = array<i64: 64, 32>}, {pipeline_mode = #tpu.pipeline_mode<synchronous>, transform_indices = @transform_1, window_bounds = array<i64: 32, 16>}, {pipeline_mode = #tpu.pipeline_mode<synchronous>, transform_indices = @transform_2, window_bounds = array<i64: 1, 16>}, {transform_indices = @transform_3, window_bounds = array<i64: 64, 1>}, {transform_indices = @transform_4, window_bounds = array<i64: 64, 16>}]} {
    %c0 = arith.constant 0 : index
    %c0_0 = arith.constant 0 : index
    %0 = vector.load %arg1[%c0, %c0_0] : memref<64x32xf32, #tpu.memory_space<vmem>>, vector<64x32xf32>
    %1 = arith.truncf %0 : vector<64x32xf32> to vector<64x32xbf16>
    %c0_1 = arith.constant 0 : index
    %c0_2 = arith.constant 0 : index
    %2 = vector.load %arg2[%c0_1, %c0_2] : memref<32x16xbf16, #tpu.memory_space<vmem>>, vector<32x16xbf16>
    %cst = arith.constant dense<0.000000e+00> : vector<64x16xf32>
    %3 = tpu.matmul %1, %2, %cst {dimension_numbers = #tpu.dot_dimension_numbers<[1], [0], [0], [1], [0, 0, 1, 1], [], []>} : vector<64x32xbf16>, vector<32x16xbf16>, vector<64x16xf32> -> vector<64x16xf32>
    %c0_3 = arith.constant 0 : index
    %c0_4 = arith.constant 0 : index
    %4 = vector.load %arg3[%c0_3, %c0_4] : memref<1x16xf32, #tpu.memory_space<vmem>>, vector<1x16xf32>
    %5 = vector.broadcast %4 : vector<1x16xf32> to vector<64x16xf32>
    %6 = arith.addf %3, %5 : vector<64x16xf32>
    %c0_5 = arith.constant 0 : index
    %c0_6 = arith.constant 0 : index
    %7 = vector.load %arg4[%c0_5, %c0_6] : memref<64x1xf32, #tpu.memory_space<vmem>>, vector<64x1xf32>
    %8 = vector.broadcast %7 : vector<64x1xf32> to vector<64x16xf32>
    %9 = arith.mulf %6, %8 : vector<64x16xf32>
    %c0_7 = arith.constant 0 : index
    %c0_8 = arith.constant 0 : index
    %10 = vector.load %arg5[%c0_7, %c0_8] : memref<64x16xf32, #tpu.memory_space<vmem>>, vector<64x16xf32>
    tpu.vector_store %arg5[%c0_7, %c0_8], %9 {strides = array<i32>} : memref<64x16xf32, #tpu.memory_space<vmem>>, vector<64x16xf32>,
    return
  }
  func.func @transform_0(%arg0: i32) -> (i32, i32) {
    %c0_i32 = arith.constant 0 : i32
    %c0_i32_0 = arith.constant 0 : i32
    return %arg0, %c0_i32 : i32, i32
  }
  func.func @transform_1(%arg0: i32) -> (i32, i32) {
    %c0_i32 = arith.constant 0 : i32
    %c0_i32_0 = arith.constant 0 : i32
    %c0_i32_1 = arith.constant 0 : i32
    return %c0_i32, %c0_i32_0 : i32, i32
  }
  func.func @transform_2(%arg0: i32) -> (i32, i32) {
    %c0_i32 = arith.constant 0 : i32
    %c0_i32_0 = arith.constant 0 : i32
    %c0_i32_1 = arith.constant 0 : i32
    return %c0_i32, %c0_i32_0 : i32, i32
  }
  func.func @transform_3(%arg0: i32) -> (i32, i32) {
    %c0_i32 = arith.constant 0 : i32
    %c0_i32_0 = arith.constant 0 : i32
    return %arg0, %c0_i32 : i32, i32
  }
  func.func @transform_4(%arg0: i32) -> (i32, i32) {
    %c0_i32 = arith.constant 0 : i32
    %c0_i32_0 = arith.constant 0 : i32
    return %arg0, %c0_i32 : i32, i32
  }
}

</mosaic_0001>

<llo_original>
// kernel: linear_dropout.1
$region0: #{linear_dropout.1}
  #allocation0 [shape = 'u32[]', space=smem, size = 0x4, offset = 0x4, fixed_abs, tag = 'smem constant byte address 0x4 - core index']
  #allocation1 [shape = 'u32[144,128]{1,0:T(1,128)}', space=vmem, size = 0x12000, scoped, tag = 'internal scratch']
  %s0 = inlined_call_operand.vmem [shape: f32[64,32], index: 0, kind: input, shape index: {}]
  %s1 = inlined_call_operand.vmem [shape: bf16[32,16], index: 1, kind: input, shape index: {}]
  %s2 = inlined_call_operand.vmem [shape: f32[1,16], index: 2, kind: input, shape index: {}]
  %s3 = inlined_call_operand.vmem [shape: f32[64,1], index: 3, kind: input, shape index: {}]
  %s4 = inlined_call_operand.hbm [shape: f32[64,16], index: 4, kind: output, shape index: {}]
  %s5 = sld [smem:[#allocation0]]
  $region26: #{linear_dropout.1} parent=0
    _
  %s7 = ssub.s32 1, %s5
  %s8 = scalar_select 0, %s7, %s5
  $region1: #{linear_dropout.1} parent=0
    #allocation2 [shape = 'u8[32768]{0}', space=vmem, size = 0x8000, scoped, tag = 'output window, operand 0, single buffered']
    #allocation3 [shape = 's32[1]{0}', space=sflag, size = 0x4, scoped, tag = 'scoped memory for linear_dropout.1']
    %9 = vsyncpa [#allocation3], 0
    // Predicated region
    $region2: #{linear_dropout.1} parent=1 // pred_check
      _
    $region3: #{linear_dropout.1} parent=1 // pred_check_branch
      %11 = sbr.rel (0) target = $region5
    $region4: #{linear_dropout.1} parent=1 // pred_region
      _
    $region5: #{linear_dropout.1} parent=1 // pred_fallthru
      _
    // Predicated region
    $region6: #{linear_dropout.1} parent=1 // pred_check
      _
    $region7: #{linear_dropout.1} parent=1 // pred_check_branch
      %13 = sbr.rel (0) target = $region9
    $region8: #{linear_dropout.1} parent=1 // pred_region
      _
    $region9: #{linear_dropout.1} parent=1 // pred_fallthru
      _
    // Predicated region
    $region10: #{linear_dropout.1} parent=1 // pred_check
      _
    $region11: #{linear_dropout.1} parent=1 // pred_check_branch
      %15 = sbr.rel (0) target = $region13
    $region12: #{linear_dropout.1} parent=1 // pred_region
      _
    $region13: #{linear_dropout.1} parent=1 // pred_fallthru
      _
    // Predicated region
    $region14: #{linear_dropout.1} parent=1 // pred_check
      _
    $region15: #{linear_dropout.1} parent=1 // pred_check_branch
      %17 = sbr.rel (0) target = $region17
    $region16: #{linear_dropout.1} parent=1 // pred_region
      _
    $region17: #{linear_dropout.1} parent=1 // pred_fallthru
      _
    %v19 = vld [vmem:[%s0] sm:$0xff]
    %v20 = vld [vmem:[%s0 + $0x8] sm:$0xff]
    %v21 = vld [vmem:[%s0 + $0x10] sm:$0xff]
    %v22 = vld [vmem:[%s0 + $0x18] sm:$0xff]
    %v23 = vld [vmem:[%s0 + $0x20] sm:$0xff]
    %v24 = vld [vmem:[%s0 + $0x28] sm:$0xff]
    %v25 = vld [vmem:[%s0 + $0x30] sm:$0xff]
    %v26 = vld [vmem:[%s0 + $0x38] sm:$0xff]
    %v27 = vpack.c.bf16 %v20, %v19
    %v28 = vpack.c.bf16 %v22, %v21
    %v29 = vpack.c.bf16 %v24, %v23
    %v30 = vpack.c.bf16 %v26, %v25
    %v31 = vld [vmem:[%s1] sm:$0xf]
    %v32 = vld [vmem:[%s1 + $0x4] sm:$0xf]
    %v33 = vld [vmem:[%s1 + $0x8] sm:$0xf]
    %v34 = vld [vmem:[%s1 + $0xc] sm:$0xf]
    %v35 = vld [vmem:[%s2] sm:$0x1]
    %v37 = vlaneseq
    %v38 = vshrl.u32 %v37, 7
    %v39 = vsub.s32 0, %v38
    %v40 = vrot.slane %v35, %v39
    %v46 = vunpack.c.l.b16 %v31
    %v47 = vunpack.c.l.b16 %v32
    %v48 = vunpack.c.l.b16 %v33
    %v49 = vunpack.c.l.b16 %v34
    %v50 = vpack.c.b16 %v47, %v46
    %v51 = vpack.c.b16 %v49, %v48
    %vm54 = vcmask 261120
    %v56 = vsel %vm54, %v27, 0
    %v59 = vsel %vm54, %v28, 0
    %v62 = vsel %vm54, %v29, 0
    %v65 = vsel %vm54, %v30, 0
    %67 = vmatprep.subr.bf16.mxu0 0
    %68 = vmatpush1.bf16.msra.mxu0 %v50
    %69 = vmatprep.subr.bf16.mxu0 0
    %70 = vmatpush1.bf16.msra.mxu0 %v51
    %71 = vmatprep.subr.bf16.mxu0 0
    %72 = vmatpush1.bf16.msra.mxu0 0
    %73 = vmatprep.subr.bf16.mxu0 0
    %74 = vmatpush1.bf16.msra.mxu0 0
    %75 = vmatprep.subr.bf16.mxu0 0
    %76 = vmatpush1.bf16.msra.mxu0 0
    %77 = vmatprep.subr.bf16.mxu0 0
    %78 = vmatpush1.bf16.msra.mxu0 0
    %79 = vmatprep.subr.bf16.mxu0 0
    %80 = vmatpush1.bf16.msra.mxu0 0
    %81 = vmatprep.subr.bf16.mxu0 0
    %82 = vmatpush1.bf16.msra.mxu0 0
    %83 = vmatprep.subr.bf16.mxu0 0
    %84 = vmatpush1.bf16.msra.mxu0 0
    %85 = vmatprep.subr.bf16.mxu0 0
    %86 = vmatpush1.bf16.msra.mxu0 0
    %87 = vmatprep.subr.bf16.mxu0 0
    %88 = vmatpush1.bf16.msra.mxu0 0
    %89 = vmatprep.subr.bf16.mxu0 0
    %90 = vmatpush1.bf16.msra.mxu0 0
    %91 = vmatprep.subr.bf16.mxu0 0
    %92 = vmatpush1.bf16.msra.mxu0 0
    %93 = vmatprep.subr.bf16.mxu0 0
    %94 = vmatpush1.bf16.msra.mxu0 0
    %95 = vmatprep.subr.bf16.mxu0 0
    %96 = vmatpush1.bf16.msra.mxu0 0
    %97 = vmatprep.subr.bf16.mxu0 0
    %98 = vmatpush1.bf16.msra.mxu0 0
    %99 = vmatprep.mubr.bf16.mxu0 0
    %100 = vmatmul.mubr.bf16.gmra.mrb[0].mxu0 %v56
    %v101 = vpop.f32.mrb[0].mxu0
    %v102 = vadd.f32 %v40, %v101
    %v103 = vpop.f32.mrb[0].mxu0
    %v104 = vpop.f32.mrb[0].mxu0
    %v105 = vadd.f32 %v40, %v104
    %v106 = vpop.f32.mrb[0].mxu0
    %107 = vmatprep.mubr.bf16.mxu0 0
    %108 = vmatmul.mubr.bf16.gmra.mrb[0].mxu0 %v59
    %v109 = vpop.f32.mrb[0].mxu0
    %v110 = vadd.f32 %v40, %v109
    %v111 = vpop.f32.mrb[0].mxu0
    %v112 = vpop.f32.mrb[0].mxu0
    %v113 = vadd.f32 %v40, %v112
    %v114 = vpop.f32.mrb[0].mxu0
    %115 = vmatprep.mubr.bf16.mxu0 0
    %116 = vmatmul.mubr.bf16.gmra.mrb[0].mxu0 %v62
    %v117 = vpop.f32.mrb[0].mxu0
    %v118 = vadd.f32 %v40, %v117
    %v119 = vpop.f32.mrb[0].mxu0
    %v120 = vpop.f32.mrb[0].mxu0
    %v121 = vadd.f32 %v40, %v120
    %v122 = vpop.f32.mrb[0].mxu0
    %123 = vmatprep.mubr.bf16.mxu0 0
    %124 = vmatmul.mubr.bf16.gmra.mrb[0].mxu0 %v65
    %v125 = vpop.f32.mrb[0].mxu0
    %v126 = vadd.f32 %v40, %v125
    %v127 = vpop.f32.mrb[0].mxu0
    %v128 = vpop.f32.mrb[0].mxu0
    %v129 = vadd.f32 %v40, %v128
    %v130 = vpop.f32.mrb[0].mxu0
    %131 = vdwg.mxu0
    %v132 = vld [vmem:[%s3] sm:$0xff]
    %v133 = vld [vmem:[%s3 + $0x8] sm:$0xff]
    %v134 = vld [vmem:[%s3 + $0x10] sm:$0xff]
    %v135 = vld [vmem:[%s3 + $0x18] sm:$0xff]
    %v136 = vld [vmem:[%s3 + $0x20] sm:$0xff]
    %v137 = vld [vmem:[%s3 + $0x28] sm:$0xff]
    %v138 = vld [vmem:[%s3 + $0x30] sm:$0xff]
    %v139 = vld [vmem:[%s3 + $0x38] sm:$0xff]
    %141 = vset.pattern.permute.xlu0 0
    %142 = vperm.xlu0 %141, %v132
    %v143 = vpop.permute.xlu0 %142
    %146 = vset.pattern.permute.xlu0 0
    %147 = vperm.xlu0 %146, %v133
    %v148 = vpop.permute.xlu0 %147
    %151 = vset.pattern.permute.xlu0 0
    %152 = vperm.xlu0 %151, %v134
    %v153 = vpop.permute.xlu0 %152
    %156 = vset.pattern.permute.xlu0 0
    %157 = vperm.xlu0 %156, %v135
    %v158 = vpop.permute.xlu0 %157
    %161 = vset.pattern.permute.xlu0 0
    %162 = vperm.xlu0 %161, %v136
    %v163 = vpop.permute.xlu0 %162
    %166 = vset.pattern.permute.xlu0 0
    %167 = vperm.xlu0 %166, %v137
    %v168 = vpop.permute.xlu0 %167
    %171 = vset.pattern.permute.xlu0 0
    %172 = vperm.xlu0 %171, %v138
    %v173 = vpop.permute.xlu0 %172
    %176 = vset.pattern.permute.xlu0 0
    %177 = vperm.xlu0 %176, %v139
    %v178 = vpop.permute.xlu0 %177
    %v180 = vmul.f32 %v102, %v143
    %v181 = vmul.f32 %v105, %v148
    %v182 = vmul.f32 %v110, %v153
    %v183 = vmul.f32 %v113, %v158
    %v184 = vmul.f32 %v118, %v163
    %v185 = vmul.f32 %v121, %v168
    %v186 = vmul.f32 %v126, %v173
    %v187 = vmul.f32 %v129, %v178
    %vm188 = vcmask 130048
    %189 = vst.msk [vmem:[#allocation2] sm:$0xff] %vm188, %v180
    %190 = vst.msk [vmem:[#allocation2 + $0x8] sm:$0xff] %vm188, %v181
    %191 = vst.msk [vmem:[#allocation2 + $0x10] sm:$0xff] %vm188, %v182
    %192 = vst.msk [vmem:[#allocation2 + $0x18] sm:$0xff] %vm188, %v183
    %193 = vst.msk [vmem:[#allocation2 + $0x20] sm:$0xff] %vm188, %v184
    %194 = vst.msk [vmem:[#allocation2 + $0x28] sm:$0xff] %vm188, %v185
    %195 = vst.msk [vmem:[#allocation2 + $0x30] sm:$0xff] %vm188, %v186
    %196 = vst.msk [vmem:[#allocation2 + $0x38] sm:$0xff] %vm188, %v187
    // Predicated region
    $region18: #{linear_dropout.1} parent=1 // pred_check
      _
    $region19: #{linear_dropout.1} parent=1 // pred_check_branch
      %198 = sbr.rel (0) target = $region21
    $region20: #{linear_dropout.1} parent=1 // pred_region
      %s200 = ssub.s32 1024, 1024
      %201 = vsyncadd [#allocation3], %s200
      %s202 = sshll.u32 [#allocation2], 4
      %s203 = int_to_ptr.vmem [resolvable:$true] %s202
      %208 = dma.vmem_to_hbm [thread:$0]  %s203, 1024, %s4, [#allocation3], 128, 128, 8
    $region21: #{linear_dropout.1} parent=1 // pred_fallthru
      _
    // Predicated region
    $region22: #{linear_dropout.1} parent=1 // pred_check
      _
    $region23: #{linear_dropout.1} parent=1 // pred_check_branch
      %210 = sbr.rel (0) target = $region25
    $region24: #{linear_dropout.1} parent=1 // pred_region
      %211 = dma.done [#allocation3], 1024
    $region25: #{linear_dropout.1} parent=1 // pred_fallthru
      _
    %212 = vsyncpa [#allocation3], 1

</llo_original>
